<compile_context>
chip_gen: v5e
topology: v5e:2x2
jax: 0.10.0
libtpu: 0.0.40
codegen_flags: <defaults>
</compile_context>

<pallas_src>
import functools

import jax
import jax.numpy as jnp
from jax.experimental import pallas as pl
from jax.experimental.pallas import tpu as pltpu


def _layernorm_kernel(x_ref, g_ref, o_ref, *, eps, inv_c):
    # x_ref: (C, TL), g_ref: (C, 1), o_ref: (C, TL)
    xf = x_ref[...].astype(jnp.float32)

    # Single-pass moments over the channel (sublane) axis.
    s1 = jnp.sum(xf, axis=0, keepdims=True)            # (1, TL)
    s2 = jnp.sum(xf * xf, axis=0, keepdims=True)       # (1, TL)
    mean = s1 * inv_c
    var = jnp.maximum(s2 * inv_c - mean * mean, 0.0)   # biased var, clamped
    inv = jax.lax.rsqrt(var + eps)

    g = g_ref[...].astype(jnp.float32)                 # (C, 1)

    # Re-read x for the normalize+scale pass: VMEM reloads are cheap and this
    # avoids keeping a full f32 copy of the tile live across the reduction
    # (matters for bf16 inputs / large C*TL tiles).
    xn = x_ref[...].astype(jnp.float32)
    o_ref[...] = ((xn - mean) * inv * g).astype(o_ref.dtype)


def _choose_length_tile(C, L, itemsize):
    """Pick a lane-dense length tile that divides L and fits the VMEM budget."""
    if L % 128 != 0:
        # Small / ragged length: take the full axis (allowed by the
        # "full-dim" exception to the (8,128) rule).
        return L
    # Budget for double-buffered input + output tiles plus f32 temporaries;
    # kept well under the 16 MiB v5e scoped default.
    budget = 8 * 1024 * 1024
    for tl in (2048, 1024, 512, 256, 128):
        if L % tl == 0:
            footprint = 2 * 2 * C * tl * itemsize + 8 * C * tl
            if footprint <= budget:
                return tl
    return 128


def layer_norm(x, g):
    """x: (B, C, L), g: (1, C, 1). Returns (B, C, L) with same dtype as x."""
    B, C, L = x.shape
    assert g.shape == (1, C, 1)

    # Match the PyTorch module's dtype-dependent epsilon.
    eps = 1e-5 if x.dtype == jnp.float32 else 1e-3

    tl = _choose_length_tile(C, L, x.dtype.itemsize)
    n_l = L // tl

    kernel = functools.partial(_layernorm_kernel, eps=eps, inv_c=1.0 / C)

    return pl.pallas_call(
        kernel,
        out_shape=jax.ShapeDtypeStruct((B, C, L), x.dtype),
        grid_spec=pltpu.PrefetchScalarGridSpec(
            num_scalar_prefetch=0,
            grid=(B, n_l),
            in_specs=[
                pl.BlockSpec((pl.Squeezed(), C, tl), lambda b, l: (b, 0, l)),
                pl.BlockSpec((pl.Squeezed(), C, 1), lambda b, l: (0, 0, 0)),
            ],
            out_specs=pl.BlockSpec((pl.Squeezed(), C, tl), lambda b, l: (b, 0, l)),
        ),
        compiler_params=pltpu.CompilerParams(
            dimension_semantics=("parallel", "parallel"),
            vmem_limit_bytes=32 * 1024 * 1024,
        ),
    )(x, g)


def pre_norm_cross(x, context, g, fn):
    """PreNormCross.forward: fn(LayerNorm(x), context).

    The normalization runs as the Pallas kernel above; `fn` is the arbitrary
    injected sub-module and is applied as a plain JAX callable on the result.
    """
    # TODO(synk): `fn` is an arbitrary user-provided nn.Module (e.g. cross
    # attention); it cannot be translated generically, so it is applied as a
    # JAX callable outside the kernel.
    return fn(layer_norm(x, g), context)


def _reference_norm(x, g):
    eps = 1e-5 if x.dtype == jnp.float32 else 1e-3
    x32 = x.astype(jnp.float32)
    mean = jnp.mean(x32, axis=1, keepdims=True)
    var = jnp.mean((x32 - mean) ** 2, axis=1, keepdims=True)
    return ((x32 - mean) * jax.lax.rsqrt(var + eps)
            * g.astype(jnp.float32)).astype(x.dtype)


if __name__ == "__main__":
    key = jax.random.PRNGKey(0)
    kx, kc = jax.random.split(key)

    B, C, L, LCTX = 2, 4, 16, 8
    x = jax.random.normal(kx, (B, C, L), dtype=jnp.float32)
    context = jax.random.normal(kc, (B, C, LCTX), dtype=jnp.float32)
    # Matches nn.Parameter(torch.ones(1, dim, 1)).
    g = jnp.ones((1, C, 1), dtype=jnp.float32)

    # Simple deterministic stand-in for the injected `fn(x, context)`.
    def demo_fn(xn, ctx):
        return xn + jnp.mean(ctx, axis=-1, keepdims=True)

    out = pre_norm_cross(x, context, g, demo_fn)
    jax.block_until_ready(out)

    ref = demo_fn(_reference_norm(x, g), context)
    assert out.shape == (B, C, L)
    assert jnp.allclose(out, ref, atol=1e-5, rtol=1e-5), "mismatch vs reference"

    print("KERNEL_OK")
</pallas_src>

<mosaic_0001>
module attributes {stable_mosaic.version = 11 : i64} {
  func.func @_layernorm_kernel(%arg0: i32, %arg1: i32, %arg2: memref<1x4x16xf32, #tpu.memory_space<vmem>>, %arg3: memref<1x4x1xf32, #tpu.memory_space<vmem>>, %arg4: memref<1x4x16xf32, #tpu.memory_space<vmem>>) attributes {dimension_semantics = [#tpu.dimension_semantics<parallel>, #tpu.dimension_semantics<parallel>], iteration_bounds = array<i64: 2, 1>, scalar_prefetch = 0 : i64, scratch_operands = 0 : i64, tpu.core_type = #tpu.core_type<tc>, window_params = [{transform_indices = @transform_0, window_bounds = array<i64: 1, 4, 16>}, {pipeline_mode = #tpu.pipeline_mode<synchronous>, transform_indices = @transform_1, window_bounds = array<i64: 1, 4, 1>}, {transform_indices = @transform_2, window_bounds = array<i64: 1, 4, 16>}]} {
    %c0 = arith.constant 0 : index
    %c0_0 = arith.constant 0 : index
    %c0_1 = arith.constant 0 : index
    %0 = vector.load %arg2[%c0, %c0_0, %c0_1] : memref<1x4x16xf32, #tpu.memory_space<vmem>>, vector<1x4x16xf32>
    %1 = vector.shape_cast %0 : vector<1x4x16xf32> to vector<4x16xf32>
    %cst = arith.constant dense<0.000000e+00> : vector<16xf32>
    %2 = vector.multi_reduction <add>, %1, %cst [0] : vector<4x16xf32> to vector<16xf32>
    %3 = vector.shape_cast %2 : vector<16xf32> to vector<1x16xf32>
    %4 = arith.mulf %1, %1 : vector<4x16xf32>
    %cst_2 = arith.constant dense<0.000000e+00> : vector<16xf32>
    %5 = vector.multi_reduction <add>, %4, %cst_2 [0] : vector<4x16xf32> to vector<16xf32>
    %6 = vector.shape_cast %5 : vector<16xf32> to vector<1x16xf32>
    %cst_3 = arith.constant 2.500000e-01 : f32
    %7 = vector.broadcast %cst_3 : f32 to vector<1x16xf32>
    %8 = arith.mulf %3, %7 : vector<1x16xf32>
    %cst_4 = arith.constant 2.500000e-01 : f32
    %9 = vector.broadcast %cst_4 : f32 to vector<1x16xf32>
    %10 = arith.mulf %6, %9 : vector<1x16xf32>
    %11 = arith.mulf %8, %8 : vector<1x16xf32>
    %12 = arith.subf %10, %11 : vector<1x16xf32>
    %cst_5 = arith.constant 0.000000e+00 : f32
    %13 = vector.broadcast %cst_5 : f32 to vector<1x16xf32>
    %14 = arith.maximumf %12, %13 : vector<1x16xf32>
    %cst_6 = arith.constant 9.99999974E-6 : f32
    %15 = vector.broadcast %cst_6 : f32 to vector<1x16xf32>
    %16 = arith.addf %14, %15 : vector<1x16xf32>
    %17 = math.rsqrt %16 : vector<1x16xf32>
    %c0_7 = arith.constant 0 : index
    %c0_8 = arith.constant 0 : index
    %c0_9 = arith.constant 0 : index
    %18 = vector.load %arg3[%c0_7, %c0_8, %c0_9] : memref<1x4x1xf32, #tpu.memory_space<vmem>>, vector<1x4x1xf32>
    %19 = vector.shape_cast %18 : vector<1x4x1xf32> to vector<4x1xf32>
    %c0_10 = arith.constant 0 : index
    %c0_11 = arith.constant 0 : index
    %c0_12 = arith.constant 0 : index
    %20 = vector.load %arg2[%c0_10, %c0_11, %c0_12] : memref<1x4x16xf32, #tpu.memory_space<vmem>>, vector<1x4x16xf32>
    %21 = vector.shape_cast %20 : vector<1x4x16xf32> to vector<4x16xf32>
    %22 = vector.broadcast %8 : vector<1x16xf32> to vector<4x16xf32>
    %23 = arith.subf %21, %22 : vector<4x16xf32>
    %24 = vector.broadcast %17 : vector<1x16xf32> to vector<4x16xf32>
    %25 = arith.mulf %23, %24 : vector<4x16xf32>
    %26 = vector.broadcast %19 : vector<4x1xf32> to vector<4x16xf32>
    %27 = arith.mulf %25, %26 : vector<4x16xf32>
    %c0_13 = arith.constant 0 : index
    %c0_14 = arith.constant 0 : index
    %c0_15 = arith.constant 0 : index
    %28 = vector.load %arg4[%c0_13, %c0_14, %c0_15] : memref<1x4x16xf32, #tpu.memory_space<vmem>>, vector<1x4x16xf32>
    %29 = vector.shape_cast %28 : vector<1x4x16xf32> to vector<4x16xf32>
    %30 = vector.shape_cast %27 : vector<4x16xf32> to vector<1x4x16xf32>
    tpu.vector_store %arg4[%c0_13, %c0_14, %c0_15], %30 {strides = array<i32>} : memref<1x4x16xf32, #tpu.memory_space<vmem>>, vector<1x4x16xf32>,
    return
  }
  func.func @transform_0(%arg0: i32, %arg1: i32) -> (i32, i32, i32) {
    %c0_i32 = arith.constant 0 : i32
    %c0_i32_0 = arith.constant 0 : i32
    return %arg0, %c0_i32, %arg1 : i32, i32, i32
  }
  func.func @transform_1(%arg0: i32, %arg1: i32) -> (i32, i32, i32) {
    %c0_i32 = arith.constant 0 : i32
    %c0_i32_0 = arith.constant 0 : i32
    %c0_i32_1 = arith.constant 0 : i32
    %c0_i32_2 = arith.constant 0 : i32
    return %c0_i32, %c0_i32_0, %c0_i32_1 : i32, i32, i32
  }
  func.func @transform_2(%arg0: i32, %arg1: i32) -> (i32, i32, i32) {
    %c0_i32 = arith.constant 0 : i32
    %c0_i32_0 = arith.constant 0 : i32
    return %arg0, %c0_i32, %arg1 : i32, i32, i32
  }
}

</mosaic_0001>

<llo_original>
// kernel: tpu_custom_call.1
$region0: #{tpu_custom_call.1}
  #allocation0 [shape = 'u32[]', space=smem, size = 0x4, offset = 0x4, fixed_abs, tag = 'smem constant byte address 0x4 - core index']
  #allocation1 [shape = 'u32[72,128]{1,0:T(1,128)}', space=vmem, size = 0x9000, scoped, tag = 'internal scratch']
  %s0 = inlined_call_operand.hbm [shape: f32[2,4,16], index: 0, kind: input, shape index: {}]
  %s1 = inlined_call_operand.vmem [shape: f32[1,4,1], index: 1, kind: input, shape index: {}]
  %s2 = inlined_call_operand.hbm [shape: f32[2,4,16], index: 2, kind: output, shape index: {}]
  %s3 = sld [smem:[#allocation0]]
  $region45: #{tpu_custom_call.1} parent=0
    _
  %s5 = ssub.s32 1, %s3
  %s6 = scalar_select 0, %s5, %s3
  $region1: #{tpu_custom_call.1} parent=0
    #allocation2 [shape = 'u8[4096]{0}', space=vmem, size = 0x1000, scoped, tag = 'input window, operand 0']
    #allocation3 [shape = 's32[2]{0}', space=sflag, size = 0x8, scoped, tag = 'scoped memory for tpu_custom_call.1']
    #allocation4 [shape = 's32[2]{0}', space=sflag, size = 0x8, scoped, tag = 'scoped memory for tpu_custom_call.1']
    #allocation5 [shape = 'u8[4096]{0}', space=vmem, size = 0x1000, scoped, tag = 'output window, operand 0']
    %7 = vsyncpa [#allocation3], 0
    %s8 = scalar_lea.sflag [#allocation3], 1
    %9 = vsyncpa %s8, 0
    %10 = vsyncpa [#allocation4], 0
    %s11 = scalar_lea.sflag [#allocation4], 1
    %12 = vsyncpa %s11, 0
    loop: start=0, step=1, limit=4
    $region2: #{tpu_custom_call.1} parent=1 // loop_pre_header
      _
    $region3: #{tpu_custom_call.1} parent=1 // loop_header
      %s14 = sphi 0, %s18
      %p15 = scmp.ge.s32.totalorder %s14, 4
      %s21 = sphi 0, %s33
      %s22 = sphi 0, %s29
      %s23 = sphi 0, %s21
      %s24 = sphi 0, %s22
      %s25 = sphi 0, %s23
      %s26 = sphi 0, %s24
      %s38 = sphi 0, %s40
      %s41 = sphi 0, %s38
      %s42 = sphi 0, %s41
      %s58 = sphi 0, %s42
      %s62 = sphi 0, %s62
      %s64 = sphi 0, %s62
      %s65 = sphi 0, %s64
      %s79 = sphi 0, %s65
      %s87 = sphi 0, %s89
      %s90 = sphi 0, %s87
      %s91 = sphi 0, %s90
      %s107 = sphi 0, %s91
    $region4: #{tpu_custom_call.1} parent=1 // loop_header_branch
      %17 = sbr.rel (%p15) target = $region8
    $region5: #{tpu_custom_call.1} parent=1 // loop_body
      %s19 = ssub.s32 %s14, 1
      %s20 = ssub.s32 %s14, 2
      %s27 = sadd.s32 1, %s22
      %p28 = scmp.ge.s32.totalorder %s27, 1
      %s29 = scalar_select %p28, 0, %s27
      %s30 = sadd.s32 1, %s21
      %s31 = scalar_select %p28, %s30, %s21
      %p32 = scmp.ge.s32.totalorder %s31, 2
      %s33 = scalar_select %p32, 0, %s31
      %s34 = ssub.s32 %s21, %s33
      %s35 = ssub.s32 %s22, %s29
      %s36 = sor.u32 %s34, %s35
      %p37 = scmp.eq.s32.totalorder %s36, 0
      %s39 = sadd.s32 %s38, 1
      %s40 = scalar_select %p37, %s38, %s39
      %p43 = pneg %p37
      %p44 = scmp.eq.s32.totalorder %s14, 1
      %p45 = por %p43, %p44
      %p46 = scmp.ne.s32.totalorder %s38, %s41
      %p47 = scmp.eq.s32.totalorder %s14, 0
      %p48 = por %p46, %p47
      %p49 = scmp.ne.s32.totalorder %s38, %s41
      %p50 = scmp.eq.s32.totalorder %s19, 1
      %p51 = por %p49, %p50
      %p52 = scmp.ne.s32.totalorder %s41, %s42
      %p53 = scmp.eq.s32.totalorder %s19, 0
      %p54 = por %p52, %p53
      %p55 = scmp.ne.s32.totalorder %s41, %s42
      %p56 = scmp.eq.s32.totalorder %s20, 1
      %p57 = por %p55, %p56
      %p59 = scmp.ne.s32.totalorder %s42, %s58
      %p60 = scmp.eq.s32.totalorder %s20, 0
      %p61 = por %p59, %p60
      %s63 = sadd.s32 %s62, 1
      %p66 = scmp.eq.s32.totalorder %s14, 1
      %p67 = scmp.ne.s32.totalorder %s62, %s64
      %p68 = scmp.eq.s32.totalorder %s14, 0
      %p69 = por %p67, %p68
      %p70 = scmp.ne.s32.totalorder %s62, %s64
      %p71 = scmp.eq.s32.totalorder %s19, 1
      %p72 = por %p70, %p71
      %p73 = scmp.ne.s32.totalorder %s64, %s65
      %p74 = scmp.eq.s32.totalorder %s19, 0
      %p75 = por %p73, %p74
      %p76 = scmp.ne.s32.totalorder %s64, %s65
      %p77 = scmp.eq.s32.totalorder %s20, 1
      %p78 = por %p76, %p77
      %p80 = scmp.ne.s32.totalorder %s65, %s79
      %p81 = scmp.eq.s32.totalorder %s20, 0
      %p82 = por %p80, %p81
      %s83 = ssub.s32 %s21, %s33
      %s84 = ssub.s32 %s22, %s29
      %s85 = sor.u32 %s83, %s84
      %p86 = scmp.eq.s32.totalorder %s85, 0
      %s88 = sadd.s32 %s87, 1
      %s89 = scalar_select %p86, %s87, %s88
      %p92 = pneg %p86
      %p93 = scmp.eq.s32.totalorder %s14, 1
      %p94 = por %p92, %p93
      %p95 = scmp.ne.s32.totalorder %s87, %s90
      %p96 = scmp.eq.s32.totalorder %s14, 0
      %p97 = por %p95, %p96
      %p98 = scmp.ne.s32.totalorder %s87, %s90
      %p99 = scmp.eq.s32.totalorder %s19, 1
      %p100 = por %p98, %p99
      %p101 = scmp.ne.s32.totalorder %s90, %s91
      %p102 = scmp.eq.s32.totalorder %s19, 0
      %p103 = por %p101, %p102
      %p104 = scmp.ne.s32.totalorder %s90, %s91
      %p105 = scmp.eq.s32.totalorder %s20, 1
      %p106 = por %p104, %p105
      %p108 = scmp.ne.s32.totalorder %s91, %s107
      %p109 = scmp.eq.s32.totalorder %s20, 0
      %p110 = por %p108, %p109
      %p111 = scmp.le.s32.totalorder 1, %s14
      %p112 = scmp.lt.s32.totalorder %s14, 3
      %p113 = pnand %p111, %p112
      %p114 = pneg %p113
      // Predicated region
      $region9: #{tpu_custom_call.1} parent=5 // pred_check
        _
      $region10: #{tpu_custom_call.1} parent=5 // pred_check_branch
        %116 = sbr.rel (%p113) target = $region12
      $region11: #{tpu_custom_call.1} parent=5 // pred_region
        %s117 = ssub.s32 %s14, 1
        // Predicated region
        $region13: #{tpu_custom_call.1} parent=11 // pred_check
          %p118 = pneg %p75
        $region14: #{tpu_custom_call.1} parent=11 // pred_check_branch
          %120 = sbr.rel (%p118) target = $region16
        $region15: #{tpu_custom_call.1} parent=11 // pred_region
          _
        $region16: #{tpu_custom_call.1} parent=11 // pred_fallthru
          _
      $region12: #{tpu_custom_call.1} parent=5 // pred_fallthru
        _
      %p121 = scmp.lt.s32.totalorder %s14, 2
      // Predicated region
      $region17: #{tpu_custom_call.1} parent=5 // pred_check
        %p122 = pneg %p121
      $region18: #{tpu_custom_call.1} parent=5 // pred_check_branch
        %124 = sbr.rel (%p122) target = $region20
      $region19: #{tpu_custom_call.1} parent=5 // pred_region
        // Predicated region
        $region21: #{tpu_custom_call.1} parent=19 // pred_check
          %p125 = pneg %p48
        $region22: #{tpu_custom_call.1} parent=19 // pred_check_branch
          %127 = sbr.rel (%p125) target = $region24
        $region23: #{tpu_custom_call.1} parent=19 // pred_region
          %s128 = sand.u32 %s38, 1
          %s129 = scalar_lea.sflag [#allocation3], %s128
          %s130 = sand.u32 %s38, 1
          %s131 = smul.addr %s130, 4
          %s132 = scalar_lea.vmem [#allocation2], %s131
          %134 = vsyncadd %s129, 0
          %s135 = sadd.s32 %s22, %s21
          %s136 = smul.addr %s135, 4
          %s137 = scalar_lea.hbm %s0, %s136
          %s139 = sshll.u32 %s137, 4
          %s140 = int_to_ptr.hbm [resolvable:$true] %s139
          %s141 = sshll.u32 %s132, 4
          %s142 = int_to_ptr.vmem [resolvable:$true] %s141
          %144 = dma.hbm_to_vmem [thread:$0]  %s140, 64, %s142, %s129
        $region24: #{tpu_custom_call.1} parent=19 // pred_fallthru
          _
      $region20: #{tpu_custom_call.1} parent=5 // pred_fallthru
        _
      %p145 = scmp.le.s32.totalorder 1, %s14
      %p146 = scmp.lt.s32.totalorder %s14, 3
      %p147 = pnand %p145, %p146
      %p148 = pneg %p147
      // Predicated region
      $region25: #{tpu_custom_call.1} parent=5 // pred_check
        _
      $region26: #{tpu_custom_call.1} parent=5 // pred_check_branch
        %150 = sbr.rel (%p147) target = $region28
      $region27: #{tpu_custom_call.1} parent=5 // pred_region
        %s151 = ssub.s32 %s14, 1
        %s152 = sand.u32 %s41, 1
        %s153 = scalar_lea.sflag [#allocation3], %s152
        %s154 = sand.u32 %s41, 1
        %s155 = smul.addr %s154, 4
        %s156 = scalar_lea.vmem [#allocation2], %s155
        // Predicated region
        $region29: #{tpu_custom_call.1} parent=27 // pred_check
          %p157 = pneg %p54
        $region30: #{tpu_custom_call.1} parent=27 // pred_check_branch
          %159 = sbr.rel (%p157) target = $region32
        $region31: #{tpu_custom_call.1} parent=27 // pred_region
          %161 = dma.done %s153, 64
        $region32: #{tpu_custom_call.1} parent=27 // pred_fallthru
          _
        %s162 = sand.u32 %s41, 1
        %s163 = scalar_lea.sflag [#allocation3], %s162
        %s164 = sand.u32 %s41, 1
        %s165 = smul.addr %s164, 4
        %s166 = scalar_lea.vmem [#allocation2], %s165
        %p167 = pneg %p54
        %p168 = pneg %p51
        %p169 = pneg %p75
        %p170 = pneg %p72
        %p171 = pneg %p103
        %p172 = pneg %p100
        %s173 = sand.u32 %s90, 1
        %s174 = scalar_lea.sflag [#allocation4], %s173
        %s175 = sand.u32 %s90, 1
        %s176 = smul.addr %s175, 4
        %s177 = scalar_lea.vmem [#allocation5], %s176
        %v178 = vld [vmem:[%s156] sm:$0xf]
        %vm179 = vcmask 125952
        %v180 = vsel %vm179, %v178, 0.0
        %v181 = vrot.slane %v180, 4
        %v182 = vadd.f32 %v180, %v181
        %v183 = vrot.slane %v182, 2
        %v184 = vadd.f32 %v182, %v183
        %v185 = vrot.slane %v184, 1
        %v186 = vadd.f32 %v184, %v185
        %v187 = vmul.f32 %v178, %v178
        %v188 = vsel %vm179, %v187, 0.0
        %v189 = vrot.slane %v188, 4
        %v190 = vadd.f32 %v188, %v189
        %v191 = vrot.slane %v190, 2
        %v192 = vadd.f32 %v190, %v191
        %v193 = vrot.slane %v192, 1
        %v194 = vadd.f32 %v192, %v193
        %v195 = vmul.f32 %v186, 0.25
        %v196 = vmul.f32 %v194, 0.25
        %v197 = vmul.f32 %v195, %v195
        %v198 = vsub.f32 %v196, %v197
        %v199 = vmax.f32 %v198, 0.0
        %v200 = vadd.f32 %v199, 1e-05
        %v201 = vrsqrt.pop %v200
        %v202 = vmul.f32 %v201, %v200
        %v203 = vmul.f32 %v202, %v201
        %v204 = vmul.f32 0.5, %v203
        %v205 = vsub.f32 1.5, %v204
        %v206 = vmul.f32 %v201, %v205
        %vm207 = vweird.f32 %v200
        %vm208 = vweird.f32 %v201
        %vm209 = vmor %vm207, %vm208
        %v210 = vsel %vm209, %v201, %v206
        %v211 = vld [vmem:[%s1] sm:$0xf]
        %v212 = vsub.f32 %v178, %v195
        %v213 = vmul.f32 %v212, %v210
        %215 = vset.pattern.permute.xlu0 0
        %216 = vperm.xlu0 %215, %v211
        %v217 = vpop.permute.xlu0 %216
        %v219 = vmul.f32 %v213, %v217
        %220 = vst.msk [vmem:[%s177] sm:$0xf] %vm179, %v219
        %s221 = sand.u32 %s90, 1
        %s222 = scalar_lea.sflag [#allocation4], %s221
        %s223 = sand.u32 %s90, 1
        %s224 = smul.addr %s223, 4
        %s225 = scalar_lea.vmem [#allocation5], %s224
        // Predicated region
        $region33: #{tpu_custom_call.1} parent=27 // pred_check
          %p226 = pneg %p100
        $region34: #{tpu_custom_call.1} parent=27 // pred_check_branch
          %228 = sbr.rel (%p226) target = $region36
        $region35: #{tpu_custom_call.1} parent=27 // pred_region
          %230 = vsyncadd %s222, 0
          %s231 = sadd.s32 %s24, %s23
          %s232 = smul.addr %s231, 4
          %s233 = scalar_lea.hbm %s2, %s232
          %s235 = sshll.u32 %s225, 4
          %s236 = int_to_ptr.vmem [resolvable:$true] %s235
          %s237 = sshll.u32 %s233, 4
          %s238 = int_to_ptr.hbm [resolvable:$true] %s237
          %240 = dma.vmem_to_hbm [thread:$0]  %s236, 64, %s238, %s222
        $region36: #{tpu_custom_call.1} parent=27 // pred_fallthru
          _
      $region28: #{tpu_custom_call.1} parent=5 // pred_fallthru
        _
      %p241 = scmp.le.s32.totalorder 2, %s14
      // Predicated region
      $region37: #{tpu_custom_call.1} parent=5 // pred_check
        %p242 = pneg %p241
      $region38: #{tpu_custom_call.1} parent=5 // pred_check_branch
        %244 = sbr.rel (%p242) target = $region40
      $region39: #{tpu_custom_call.1} parent=5 // pred_region
        %s245 = ssub.s32 %s14, 2
        // Predicated region
        $region41: #{tpu_custom_call.1} parent=39 // pred_check
          %p246 = pneg %p106
        $region42: #{tpu_custom_call.1} parent=39 // pred_check_branch
          %248 = sbr.rel (%p246) target = $region44
        $region43: #{tpu_custom_call.1} parent=39 // pred_region
          %s249 = sand.u32 %s91, 1
          %s250 = scalar_lea.sflag [#allocation4], %s249
          %s251 = sand.u32 %s91, 1
          %s252 = smul.addr %s251, 4
          %s253 = scalar_lea.vmem [#allocation5], %s252
          %255 = dma.done %s250, 64
        $region44: #{tpu_custom_call.1} parent=39 // pred_fallthru
          _
      $region40: #{tpu_custom_call.1} parent=5 // pred_fallthru
        _
    $region6: #{tpu_custom_call.1} parent=1 // loop_footer
      %s18 = sadd.s32 1, %s14
    $region7: #{tpu_custom_call.1} parent=1 // loop_footer_branch
      %13 = sbr.rel target = $region3
    $region8: #{tpu_custom_call.1} parent=1 // loop_exit
      _
    %256 = vsyncpa [#allocation3], 1
    %s257 = scalar_lea.sflag [#allocation3], 1
    %258 = vsyncpa %s257, 1
    %259 = vsyncpa [#allocation4], 1
    %s260 = scalar_lea.sflag [#allocation4], 1
    %261 = vsyncpa %s260, 1

</llo_original>
